<compile_context>
chip_gen: v6e
topology: v6e:2x2x1
jax: 0.10.0
libtpu: 0.0.40
codegen_flags: <defaults>
</compile_context>

<pallas_src>
import jax
import jax.numpy as jnp
from jax.experimental import pallas as pl
from jax.experimental.pallas import tpu as pltpu

EPS = 1e-5          # BatchNorm eps
LRELU_SLOPE = 0.01  # nn.LeakyReLU default negative slope
SE_RATIO = 2        # SE reduction ratio (channels are small here)


# ---------------------------------------------------------------------------
# helpers: tile-size selection (Python ints, trace time)
# ---------------------------------------------------------------------------
def _pick_lane_block(nhw, target=4096):
    """Largest multiple-of-128 divisor of nhw that is <= target (else nhw)."""
    if nhw <= target:
        return nhw
    for b in range(target, 0, -128):
        if nhw % b == 0:
            return b
    return nhw


def _pick_batch_per_step(n, c, hw):
    """Batch items per SE grid step: rows (bb*c) a multiple of 8 if possible,
    grown towards ~1 MiB of input per branch per step."""
    bb = None
    for cand in range(1, n + 1):
        if n % cand == 0 and (cand * c) % 8 == 0:
            bb = cand
            break
    if bb is None:
        return n
    while True:
        nxt = bb * 2
        if nxt <= n and n % nxt == 0 and nxt * c * hw * 4 <= (1 << 20):
            bb = nxt
        else:
            break
    return bb


# ---------------------------------------------------------------------------
# Encoder kernel A: BatchNorm statistics pass.
# y = W_block @ x  (bf16 MXU, f32 acc); accumulate per-row sum and sum-of-
# squares across the NHW grid axis into resident (R,1) output accumulators.
# ---------------------------------------------------------------------------
def enc_stats_kernel(x_ref, w_ref, sum_ref, sq_ref):
    @pl.when(pl.program_id(0) == 0)
    def _():
        sum_ref[...] = jnp.zeros_like(sum_ref)
        sq_ref[...] = jnp.zeros_like(sq_ref)

    y = jnp.dot(w_ref[...], x_ref[...], preferred_element_type=jnp.float32)
    sum_ref[...] += jnp.sum(y, axis=1, keepdims=True)
    sq_ref[...] += jnp.sum(y * y, axis=1, keepdims=True)


# ---------------------------------------------------------------------------
# Encoder kernel B: conv (recomputed) + folded BN scale/shift + LeakyReLU.
# ---------------------------------------------------------------------------
def enc_apply_kernel(x_ref, w_ref, sc_ref, sh_ref, y_ref):
    y = jnp.dot(w_ref[...], x_ref[...], preferred_element_type=jnp.float32)
    y = y * sc_ref[...] + sh_ref[...]
    y_ref[...] = jnp.where(y >= 0, y, LRELU_SLOPE * y)


def encoder_pallas(x2, w_block, gamma2, beta2):
    """x2: (R, NHW) bf16 stacked [real;imag] activations (R = 2*Cp).
    w_block: (R, R) bf16 block complex weight. gamma2/beta2: (R, 1) f32."""
    R, NHW = x2.shape
    bn = _pick_lane_block(NHW)
    grid = (NHW // bn,)

    x_spec = pl.BlockSpec((R, bn), lambda i: (0, i))
    w_spec = pl.BlockSpec((R, R), lambda i: (0, 0))
    v_spec = pl.BlockSpec((R, 1), lambda i: (0, 0))

    # Pass 1: global BN statistics (arbitrary axis -> resident accumulators).
    ssum, ssq = pl.pallas_call(
        enc_stats_kernel,
        out_shape=(jax.ShapeDtypeStruct((R, 1), jnp.float32),
                   jax.ShapeDtypeStruct((R, 1), jnp.float32)),
        grid=grid,
        in_specs=[x_spec, w_spec],
        out_specs=(v_spec, v_spec),
        compiler_params=pltpu.CompilerParams(
            dimension_semantics=("arbitrary",)),
    )(x2, w_block)

    # Fold stats into per-channel scale/shift (tiny, XLA).
    mean = ssum / NHW
    var = jnp.maximum(ssq / NHW - mean * mean, 0.0)
    scale = gamma2 * jax.lax.rsqrt(var + EPS)
    shift = beta2 - mean * scale

    # Pass 2: conv recompute + affine + LeakyReLU (parallel NHW axis).
    y2 = pl.pallas_call(
        enc_apply_kernel,
        out_shape=jax.ShapeDtypeStruct((R, NHW), jnp.float32),
        grid=grid,
        in_specs=[x_spec, w_spec, v_spec, v_spec],
        out_specs=pl.BlockSpec((R, bn), lambda i: (0, i)),
        compiler_params=pltpu.CompilerParams(
            dimension_semantics=("parallel",)),
    )(x2, w_block, scale, shift)
    return y2


# ---------------------------------------------------------------------------
# SE kernel: amplitude and phase branches in the same grid step, on a
# sublane-dense (N*C, HW) layout (rb = batch_per_step * C rows per block).
# The per-sample FC layers use block-diagonal expanded weights (kron with
# I_bb) so no in-kernel reshapes are needed; tiny FCs run on VPU/XLU.
# ---------------------------------------------------------------------------
def se_kernel(amp_ref, pha_ref, w1_ref, w2_ref, amp_o_ref, pha_o_ref):
    w1 = w1_ref[...]                                         # (rb, bb*Cr)
    w2 = w2_ref[...]                                         # (rb, bb*Cr)

    def gate(v):
        s = jnp.mean(v, axis=1, keepdims=True)               # squeeze: (rb, 1)
        h = jnp.sum(w1 * s, axis=0, keepdims=True)           # FC1: (1, bb*Cr)
        h = jnp.maximum(h, 0.0)
        g = jnp.sum(w2 * h, axis=1, keepdims=True)           # FC2: (rb, 1)
        return 1.0 / (1.0 + jnp.exp(-g))                     # sigmoid

    a = amp_ref[...]
    p = pha_ref[...]
    amp_o_ref[...] = a * gate(a)                             # lane-dense stores
    pha_o_ref[...] = p * gate(p)


def se_pallas(amp2, pha2, w1e, w2e, rb):
    """amp2/pha2: (N*C, HW) f32. w1e/w2e: (rb, bb*Cr) block-diagonal f32."""
    R, HW = amp2.shape
    grid = (R // rb,)
    v_spec = pl.BlockSpec((rb, HW), lambda i: (i, 0))
    w_spec = pl.BlockSpec(w1e.shape, lambda i: (0, 0))
    out_sd = jax.ShapeDtypeStruct((R, HW), jnp.float32)
    return pl.pallas_call(
        se_kernel,
        out_shape=(out_sd, out_sd),
        grid=grid,
        in_specs=[v_spec, v_spec, w_spec, w_spec],
        out_specs=(v_spec, v_spec),
        compiler_params=pltpu.CompilerParams(
            dimension_semantics=("parallel",)),
    )(amp2, pha2, w1e, w2e)


# ---------------------------------------------------------------------------
# Full FFTNet forward.
# ---------------------------------------------------------------------------
@jax.jit
def fftnet_pallas(x, wr, wi, gr, br, gi, bi, w1, w2):
    N, C, H, W = x.shape
    HW = H * W
    NHW = N * HW
    Cp = ((C + 7) // 8) * 8          # sublane-align the channel dim
    R = 2 * Cp

    xf = jnp.fft.fft2(x)             # complex64 (last two dims)

    # lane-dense (C, N*H*W) layout, cast to bf16 in the wrapper (halves DMA).
    def to_flat(t):
        return jnp.transpose(t, (1, 0, 2, 3)).reshape(C, NHW).astype(jnp.bfloat16)

    xr = to_flat(jnp.real(xf))
    xi = to_flat(jnp.imag(xf))
    x2 = (jnp.zeros((R, NHW), jnp.bfloat16)
          .at[:C].set(xr).at[Cp:Cp + C].set(xi))

    # block complex weight [[Wr, -Wi], [Wi, Wr]], channel-padded, bf16.
    wrp = jnp.zeros((Cp, Cp), jnp.float32).at[:C, :C].set(wr)
    wip = jnp.zeros((Cp, Cp), jnp.float32).at[:C, :C].set(wi)
    w_top = jnp.concatenate([wrp, -wip], axis=1)
    w_bot = jnp.concatenate([wip, wrp], axis=1)
    w_block = jnp.concatenate([w_top, w_bot], axis=0).astype(jnp.bfloat16)

    pad_vec = lambda v: jnp.zeros((Cp, 1), jnp.float32).at[:C].set(v.reshape(C, 1))
    gamma2 = jnp.concatenate([pad_vec(gr), pad_vec(gi)], axis=0)
    beta2 = jnp.concatenate([pad_vec(br), pad_vec(bi)], axis=0)

    y2 = encoder_pallas(x2, w_block, gamma2, beta2)          # (R, NHW) f32

    # back to (N, C, H, W); abs / angle stay in XLA (no guaranteed atan2 in Mosaic).
    def from_flat(t):
        return jnp.transpose(t.reshape(C, N, H, W), (1, 0, 2, 3))

    yr = from_flat(y2[:C])
    yi = from_flat(y2[Cp:Cp + C])
    amp = jnp.sqrt(yr * yr + yi * yi).reshape(N * C, HW)
    pha = jnp.arctan2(yi, yr).reshape(N * C, HW)

    # fftshift / ifftshift around SE are eliminated: batch & spatial shifts
    # commute with the per-(b,c) gate and cancel; the channel shift is folded
    # into the SE weights by rolling them by C//2 (torch fftshift semantics).
    kc = C // 2
    w1r = jnp.roll(w1, -kc, axis=1)                          # (Cr, C)
    w2r = jnp.roll(w2, -kc, axis=0)                          # (C, Cr)

    bb = _pick_batch_per_step(N, C, HW)
    eye_b = jnp.eye(bb, dtype=jnp.float32)
    w1e = jnp.kron(eye_b, jnp.transpose(w1r))                # (bb*C, bb*Cr)
    w2e = jnp.kron(eye_b, w2r)                               # (bb*C, bb*Cr)

    amp_g, pha_g = se_pallas(amp, pha, w1e, w2e, bb * C)

    amp_g = amp_g.reshape(N, C, H, W)
    pha_g = pha_g.reshape(N, C, H, W)
    # TODO(synk): cos/sin reconstruction kept in XLA (Mosaic sin/cos lowering
    #             not guaranteed); XLA fuses it with the multiplies.
    z = jax.lax.complex(amp_g * jnp.cos(pha_g), amp_g * jnp.sin(pha_g))
    return jnp.real(jnp.fft.ifft2(z)).astype(jnp.float32)


# ---------------------------------------------------------------------------
# Pure-JAX reference with identical (assumed) submodule semantics, written
# literally (explicit fftshift / SE / ifftshift) to validate the algebraic
# eliminations in the Pallas path.
# ---------------------------------------------------------------------------
def fftnet_reference(x, wr, wi, gr, br, gi, bi, w1, w2):
    N, C, H, W = x.shape
    xf = jnp.fft.fft2(x)

    def mm(a, b):
        return jnp.dot(a.astype(jnp.bfloat16), b.astype(jnp.bfloat16),
                       preferred_element_type=jnp.float32)

    xr = jnp.transpose(jnp.real(xf), (1, 0, 2, 3)).reshape(C, -1)
    xi = jnp.transpose(jnp.imag(xf), (1, 0, 2, 3)).reshape(C, -1)
    yr = mm(wr, xr) - mm(wi, xi)
    yi = mm(wr, xi) + mm(wi, xr)

    def bn(yv, gamma, beta):
        mu = yv.mean(axis=1, keepdims=True)
        var = ((yv - mu) ** 2).mean(axis=1, keepdims=True)
        return (yv - mu) * jax.lax.rsqrt(var + EPS) * gamma.reshape(C, 1) + beta.reshape(C, 1)

    lrelu = lambda t: jnp.where(t >= 0, t, LRELU_SLOPE * t)
    yr = lrelu(bn(yr, gr, br))
    yi = lrelu(bn(yi, gi, bi))
    unflat = lambda t: jnp.transpose(t.reshape(C, N, H, W), (1, 0, 2, 3))
    y = jax.lax.complex(unflat(yr), unflat(yi))

    def se(v):
        s = v.mean(axis=(2, 3))                              # (B, C)
        h = jnp.maximum(s @ w1.T, 0.0)                       # (B, Cr)
        g = 1.0 / (1.0 + jnp.exp(-(h @ w2.T)))               # (B, C)
        return v * g[:, :, None, None]

    amp = jnp.fft.ifftshift(se(jnp.fft.fftshift(jnp.abs(y))))
    pha = jnp.fft.ifftshift(se(jnp.fft.fftshift(jnp.angle(y))))
    z = jax.lax.complex(amp * jnp.cos(pha), amp * jnp.sin(pha))
    return jnp.real(jnp.fft.ifft2(z)).astype(jnp.float32)


if __name__ == "__main__":
    N, C, H, W = 2, 4, 16, 16
    key = jax.random.PRNGKey(0)
    ks = jax.random.split(key, 9)

    x = jax.random.normal(ks[0], (N, C, H, W), dtype=jnp.float32)
    wr = jax.random.normal(ks[1], (C, C), dtype=jnp.float32) / jnp.sqrt(C)
    wi = jax.random.normal(ks[2], (C, C), dtype=jnp.float32) / jnp.sqrt(C)
    gr = 1.0 + 0.1 * jax.random.normal(ks[3], (C,), dtype=jnp.float32)
    br = 0.1 * jax.random.normal(ks[4], (C,), dtype=jnp.float32)
    gi = 1.0 + 0.1 * jax.random.normal(ks[5], (C,), dtype=jnp.float32)
    bi = 0.1 * jax.random.normal(ks[6], (C,), dtype=jnp.float32)
    Cr = max(1, C // SE_RATIO)
    w1 = jax.random.normal(ks[7], (Cr, C), dtype=jnp.float32) / jnp.sqrt(C)
    w2 = jax.random.normal(ks[8], (C, Cr), dtype=jnp.float32) / jnp.sqrt(Cr)

    out = jax.block_until_ready(fftnet_pallas(x, wr, wi, gr, br, gi, bi, w1, w2))
    ref = jax.block_until_ready(fftnet_reference(x, wr, wi, gr, br, gi, bi, w1, w2))

    assert out.shape == (N, C, H, W)
    err = float(jnp.max(jnp.abs(out - ref)))
    assert jnp.allclose(out, ref, atol=2e-3, rtol=2e-3), err

    print("KERNEL_OK")
</pallas_src>

<mosaic_0001>
module attributes {stable_mosaic.version = 11 : i64} {
  func.func @enc_stats_kernel(%arg0: i32, %arg1: memref<16x512xbf16, #tpu.memory_space<vmem>>, %arg2: memref<16x16xbf16, #tpu.memory_space<vmem>>, %arg3: memref<16x1xf32, #tpu.memory_space<vmem>>, %arg4: memref<16x1xf32, #tpu.memory_space<vmem>>) attributes {dimension_semantics = [#tpu.dimension_semantics<arbitrary>], iteration_bounds = array<i64: 1>, scalar_prefetch = 0 : i64, scratch_operands = 0 : i64, tpu.core_type = #tpu.core_type<tc>, window_params = [{transform_indices = @transform_0, window_bounds = array<i64: 16, 512>}, {pipeline_mode = #tpu.pipeline_mode<synchronous>, transform_indices = @transform_1, window_bounds = array<i64: 16, 16>}, {pipeline_mode = #tpu.pipeline_mode<synchronous>, transform_indices = @transform_2, window_bounds = array<i64: 16, 1>}, {pipeline_mode = #tpu.pipeline_mode<synchronous>, transform_indices = @transform_3, window_bounds = array<i64: 16, 1>}]} {
    %c0_i32 = arith.constant 0 : i32
    %0 = arith.cmpi eq, %arg0, %c0_i32 : i32
    %1 = arith.extui %0 : i1 to i32
    %c0_i32_0 = arith.constant 0 : i32
    %2 = arith.cmpi ne, %1, %c0_i32_0 : i32
    scf.if %2 {
      %cst_14 = arith.constant 0.000000e+00 : f32
      %17 = vector.broadcast %cst_14 : f32 to vector<16x1xf32>
      %c0_15 = arith.constant 0 : index
      %c0_16 = arith.constant 0 : index
      %18 = vector.load %arg3[%c0_15, %c0_16] : memref<16x1xf32, #tpu.memory_space<vmem>>, vector<16x1xf32>
      tpu.vector_store %arg3[%c0_15, %c0_16], %17 {strides = array<i32>} : memref<16x1xf32, #tpu.memory_space<vmem>>, vector<16x1xf32>,
      %cst_17 = arith.constant 0.000000e+00 : f32
      %19 = vector.broadcast %cst_17 : f32 to vector<16x1xf32>
      %c0_18 = arith.constant 0 : index
      %c0_19 = arith.constant 0 : index
      %20 = vector.load %arg4[%c0_18, %c0_19] : memref<16x1xf32, #tpu.memory_space<vmem>>, vector<16x1xf32>
      tpu.vector_store %arg4[%c0_18, %c0_19], %19 {strides = array<i32>} : memref<16x1xf32, #tpu.memory_space<vmem>>, vector<16x1xf32>,
    } else {
    }
    %c0 = arith.constant 0 : index
    %c0_1 = arith.constant 0 : index
    %3 = vector.load %arg2[%c0, %c0_1] : memref<16x16xbf16, #tpu.memory_space<vmem>>, vector<16x16xbf16>
    %c0_2 = arith.constant 0 : index
    %c0_3 = arith.constant 0 : index
    %4 = vector.load %arg1[%c0_2, %c0_3] : memref<16x512xbf16, #tpu.memory_space<vmem>>, vector<16x512xbf16>
    %cst = arith.constant dense<0.000000e+00> : vector<16x512xf32>
    %5 = tpu.matmul %3, %4, %cst {dimension_numbers = #tpu.dot_dimension_numbers<[1], [0], [0], [1], [0, 0, 1, 1], [], []>} : vector<16x16xbf16>, vector<16x512xbf16>, vector<16x512xf32> -> vector<16x512xf32>
    %c0_4 = arith.constant 0 : index
    %c0_5 = arith.constant 0 : index
    %6 = vector.load %arg3[%c0_4, %c0_5] : memref<16x1xf32, #tpu.memory_space<vmem>>, vector<16x1xf32>
    %cst_6 = arith.constant dense<0.000000e+00> : vector<16xf32>
    %7 = vector.multi_reduction <add>, %5, %cst_6 [1] : vector<16x512xf32> to vector<16xf32>
    %8 = vector.shape_cast %7 : vector<16xf32> to vector<16x1xf32>
    %9 = arith.addf %6, %8 : vector<16x1xf32>
    %c0_7 = arith.constant 0 : index
    %c0_8 = arith.constant 0 : index
    %10 = vector.load %arg3[%c0_7, %c0_8] : memref<16x1xf32, #tpu.memory_space<vmem>>, vector<16x1xf32>
    tpu.vector_store %arg3[%c0_7, %c0_8], %9 {strides = array<i32>} : memref<16x1xf32, #tpu.memory_space<vmem>>, vector<16x1xf32>,
    %c0_9 = arith.constant 0 : index
    %c0_10 = arith.constant 0 : index
    %11 = vector.load %arg4[%c0_9, %c0_10] : memref<16x1xf32, #tpu.memory_space<vmem>>, vector<16x1xf32>
    %12 = arith.mulf %5, %5 : vector<16x512xf32>
    %cst_11 = arith.constant dense<0.000000e+00> : vector<16xf32>
    %13 = vector.multi_reduction <add>, %12, %cst_11 [1] : vector<16x512xf32> to vector<16xf32>
    %14 = vector.shape_cast %13 : vector<16xf32> to vector<16x1xf32>
    %15 = arith.addf %11, %14 : vector<16x1xf32>
    %c0_12 = arith.constant 0 : index
    %c0_13 = arith.constant 0 : index
    %16 = vector.load %arg4[%c0_12, %c0_13] : memref<16x1xf32, #tpu.memory_space<vmem>>, vector<16x1xf32>
    tpu.vector_store %arg4[%c0_12, %c0_13], %15 {strides = array<i32>} : memref<16x1xf32, #tpu.memory_space<vmem>>, vector<16x1xf32>,
    return
  }
  func.func @transform_0(%arg0: i32) -> (i32, i32) {
    %c0_i32 = arith.constant 0 : i32
    %c0_i32_0 = arith.constant 0 : i32
    return %c0_i32, %arg0 : i32, i32
  }
  func.func @transform_1(%arg0: i32) -> (i32, i32) {
    %c0_i32 = arith.constant 0 : i32
    %c0_i32_0 = arith.constant 0 : i32
    %c0_i32_1 = arith.constant 0 : i32
    return %c0_i32, %c0_i32_0 : i32, i32
  }
  func.func @transform_2(%arg0: i32) -> (i32, i32) {
    %c0_i32 = arith.constant 0 : i32
    %c0_i32_0 = arith.constant 0 : i32
    %c0_i32_1 = arith.constant 0 : i32
    return %c0_i32, %c0_i32_0 : i32, i32
  }
  func.func @transform_3(%arg0: i32) -> (i32, i32) {
    %c0_i32 = arith.constant 0 : i32
    %c0_i32_0 = arith.constant 0 : i32
    %c0_i32_1 = arith.constant 0 : i32
    return %c0_i32, %c0_i32_0 : i32, i32
  }
}

module attributes {stable_mosaic.version = 11 : i64} {
  func.func @enc_apply_kernel(%arg0: i32, %arg1: memref<16x512xbf16, #tpu.memory_space<vmem>>, %arg2: memref<16x16xbf16, #tpu.memory_space<vmem>>, %arg3: memref<16x1xf32, #tpu.memory_space<vmem>>, %arg4: memref<16x1xf32, #tpu.memory_space<vmem>>, %arg5: memref<16x512xf32, #tpu.memory_space<vmem>>) attributes {dimension_semantics = [#tpu.dimension_semantics<parallel>], iteration_bounds = array<i64: 1>, scalar_prefetch = 0 : i64, scratch_operands = 0 : i64, tpu.core_type = #tpu.core_type<tc>, window_params = [{transform_indices = @transform_0, window_bounds = array<i64: 16, 512>}, {pipeline_mode = #tpu.pipeline_mode<synchronous>, transform_indices = @transform_1, window_bounds = array<i64: 16, 16>}, {pipeline_mode = #tpu.pipeline_mode<synchronous>, transform_indices = @transform_2, window_bounds = array<i64: 16, 1>}, {pipeline_mode = #tpu.pipeline_mode<synchronous>, transform_indices = @transform_3, window_bounds = array<i64: 16, 1>}, {transform_indices = @transform_4, window_bounds = array<i64: 16, 512>}]} {
    %c0 = arith.constant 0 : index
    %c0_0 = arith.constant 0 : index
    %0 = vector.load %arg2[%c0, %c0_0] : memref<16x16xbf16, #tpu.memory_space<vmem>>, vector<16x16xbf16>
    %c0_1 = arith.constant 0 : index
    %c0_2 = arith.constant 0 : index
    %1 = vector.load %arg1[%c0_1, %c0_2] : memref<16x512xbf16, #tpu.memory_space<vmem>>, vector<16x512xbf16>
    %cst = arith.constant dense<0.000000e+00> : vector<16x512xf32>
    %2 = tpu.matmul %0, %1, %cst {dimension_numbers = #tpu.dot_dimension_numbers<[1], [0], [0], [1], [0, 0, 1, 1], [], []>} : vector<16x16xbf16>, vector<16x512xbf16>, vector<16x512xf32> -> vector<16x512xf32>
    %c0_3 = arith.constant 0 : index
    %c0_4 = arith.constant 0 : index
    %3 = vector.load %arg3[%c0_3, %c0_4] : memref<16x1xf32, #tpu.memory_space<vmem>>, vector<16x1xf32>
    %4 = vector.broadcast %3 : vector<16x1xf32> to vector<16x512xf32>
    %5 = arith.mulf %2, %4 : vector<16x512xf32>
    %c0_5 = arith.constant 0 : index
    %c0_6 = arith.constant 0 : index
    %6 = vector.load %arg4[%c0_5, %c0_6] : memref<16x1xf32, #tpu.memory_space<vmem>>, vector<16x1xf32>
    %7 = vector.broadcast %6 : vector<16x1xf32> to vector<16x512xf32>
    %8 = arith.addf %5, %7 : vector<16x512xf32>
    %cst_7 = arith.constant 0.000000e+00 : f32
    %9 = vector.broadcast %cst_7 : f32 to vector<16x512xf32>
    %10 = arith.cmpf oge, %8, %9 : vector<16x512xf32>
    %cst_8 = arith.constant 0.00999999977 : f32
    %11 = vector.broadcast %cst_8 : f32 to vector<16x512xf32>
    %12 = arith.mulf %11, %8 : vector<16x512xf32>
    %13 = arith.select %10, %8, %12 : vector<16x512xi1>, vector<16x512xf32>
    %c0_9 = arith.constant 0 : index
    %c0_10 = arith.constant 0 : index
    %14 = vector.load %arg5[%c0_9, %c0_10] : memref<16x512xf32, #tpu.memory_space<vmem>>, vector<16x512xf32>
    tpu.vector_store %arg5[%c0_9, %c0_10], %13 {strides = array<i32>} : memref<16x512xf32, #tpu.memory_space<vmem>>, vector<16x512xf32>,
    return
  }
  func.func @transform_0(%arg0: i32) -> (i32, i32) {
    %c0_i32 = arith.constant 0 : i32
    %c0_i32_0 = arith.constant 0 : i32
    return %c0_i32, %arg0 : i32, i32
  }
  func.func @transform_1(%arg0: i32) -> (i32, i32) {
    %c0_i32 = arith.constant 0 : i32
    %c0_i32_0 = arith.constant 0 : i32
    %c0_i32_1 = arith.constant 0 : i32
    return %c0_i32, %c0_i32_0 : i32, i32
  }
  func.func @transform_2(%arg0: i32) -> (i32, i32) {
    %c0_i32 = arith.constant 0 : i32
    %c0_i32_0 = arith.constant 0 : i32
    %c0_i32_1 = arith.constant 0 : i32
    return %c0_i32, %c0_i32_0 : i32, i32
  }
  func.func @transform_3(%arg0: i32) -> (i32, i32) {
    %c0_i32 = arith.constant 0 : i32
    %c0_i32_0 = arith.constant 0 : i32
    %c0_i32_1 = arith.constant 0 : i32
    return %c0_i32, %c0_i32_0 : i32, i32
  }
  func.func @transform_4(%arg0: i32) -> (i32, i32) {
    %c0_i32 = arith.constant 0 : i32
    %c0_i32_0 = arith.constant 0 : i32
    return %c0_i32, %arg0 : i32, i32
  }
}

module attributes {stable_mosaic.version = 11 : i64} {
  func.func @se_kernel(%arg0: i32, %arg1: memref<8x256xf32, #tpu.memory_space<vmem>>, %arg2: memref<8x256xf32, #tpu.memory_space<vmem>>, %arg3: memref<8x4xf32, #tpu.memory_space<vmem>>, %arg4: memref<8x4xf32, #tpu.memory_space<vmem>>, %arg5: memref<8x256xf32, #tpu.memory_space<vmem>>, %arg6: memref<8x256xf32, #tpu.memory_space<vmem>>) attributes {dimension_semantics = [#tpu.dimension_semantics<parallel>], iteration_bounds = array<i64: 1>, scalar_prefetch = 0 : i64, scratch_operands = 0 : i64, tpu.core_type = #tpu.core_type<tc>, window_params = [{transform_indices = @transform_0, window_bounds = array<i64: 8, 256>}, {transform_indices = @transform_1, window_bounds = array<i64: 8, 256>}, {pipeline_mode = #tpu.pipeline_mode<synchronous>, transform_indices = @transform_2, window_bounds = array<i64: 8, 4>}, {pipeline_mode = #tpu.pipeline_mode<synchronous>, transform_indices = @transform_3, window_bounds = array<i64: 8, 4>}, {transform_indices = @transform_4, window_bounds = array<i64: 8, 256>}, {transform_indices = @transform_5, window_bounds = array<i64: 8, 256>}]} {
    %c0 = arith.constant 0 : index
    %c0_0 = arith.constant 0 : index
    %0 = vector.load %arg3[%c0, %c0_0] : memref<8x4xf32, #tpu.memory_space<vmem>>, vector<8x4xf32>
    %c0_1 = arith.constant 0 : index
    %c0_2 = arith.constant 0 : index
    %1 = vector.load %arg4[%c0_1, %c0_2] : memref<8x4xf32, #tpu.memory_space<vmem>>, vector<8x4xf32>
    %c0_3 = arith.constant 0 : index
    %c0_4 = arith.constant 0 : index
    %2 = vector.load %arg1[%c0_3, %c0_4] : memref<8x256xf32, #tpu.memory_space<vmem>>, vector<8x256xf32>
    %c0_5 = arith.constant 0 : index
    %c0_6 = arith.constant 0 : index
    %3 = vector.load %arg2[%c0_5, %c0_6] : memref<8x256xf32, #tpu.memory_space<vmem>>, vector<8x256xf32>
    %cst = arith.constant dense<0.000000e+00> : vector<8xf32>
    %4 = vector.multi_reduction <add>, %2, %cst [1] : vector<8x256xf32> to vector<8xf32>
    %5 = vector.shape_cast %4 : vector<8xf32> to vector<8x1xf32>
    %cst_7 = arith.constant 2.560000e+02 : f32
    %6 = vector.broadcast %cst_7 : f32 to vector<8x1xf32>
    %7 = arith.divf %5, %6 : vector<8x1xf32>
    %8 = vector.broadcast %7 : vector<8x1xf32> to vector<8x4xf32>
    %9 = arith.mulf %0, %8 : vector<8x4xf32>
    %cst_8 = arith.constant dense<0.000000e+00> : vector<4xf32>
    %10 = vector.multi_reduction <add>, %9, %cst_8 [0] : vector<8x4xf32> to vector<4xf32>
    %11 = vector.shape_cast %10 : vector<4xf32> to vector<1x4xf32>
    %cst_9 = arith.constant 0.000000e+00 : f32
    %12 = vector.broadcast %cst_9 : f32 to vector<1x4xf32>
    %13 = arith.maximumf %11, %12 : vector<1x4xf32>
    %14 = vector.broadcast %13 : vector<1x4xf32> to vector<8x4xf32>
    %15 = arith.mulf %1, %14 : vector<8x4xf32>
    %cst_10 = arith.constant dense<0.000000e+00> : vector<8xf32>
    %16 = vector.multi_reduction <add>, %15, %cst_10 [1] : vector<8x4xf32> to vector<8xf32>
    %17 = vector.shape_cast %16 : vector<8xf32> to vector<8x1xf32>
    %cst_11 = arith.constant 0.000000e+00 : f32
    %18 = vector.broadcast %cst_11 : f32 to vector<8x1xf32>
    %19 = arith.subf %18, %17 : vector<8x1xf32>
    %20 = math.exp %19 : vector<8x1xf32>
    %cst_12 = arith.constant 1.000000e+00 : f32
    %21 = vector.broadcast %cst_12 : f32 to vector<8x1xf32>
    %22 = arith.addf %21, %20 : vector<8x1xf32>
    %cst_13 = arith.constant 1.000000e+00 : f32
    %23 = vector.broadcast %cst_13 : f32 to vector<8x1xf32>
    %24 = arith.divf %23, %22 : vector<8x1xf32>
    %25 = vector.broadcast %24 : vector<8x1xf32> to vector<8x256xf32>
    %26 = arith.mulf %2, %25 : vector<8x256xf32>
    %c0_14 = arith.constant 0 : index
    %c0_15 = arith.constant 0 : index
    %27 = vector.load %arg5[%c0_14, %c0_15] : memref<8x256xf32, #tpu.memory_space<vmem>>, vector<8x256xf32>
    tpu.vector_store %arg5[%c0_14, %c0_15], %26 {strides = array<i32>} : memref<8x256xf32, #tpu.memory_space<vmem>>, vector<8x256xf32>,
    %cst_16 = arith.constant dense<0.000000e+00> : vector<8xf32>
    %28 = vector.multi_reduction <add>, %3, %cst_16 [1] : vector<8x256xf32> to vector<8xf32>
    %29 = vector.shape_cast %28 : vector<8xf32> to vector<8x1xf32>
    %cst_17 = arith.constant 2.560000e+02 : f32
    %30 = vector.broadcast %cst_17 : f32 to vector<8x1xf32>
    %31 = arith.divf %29, %30 : vector<8x1xf32>
    %32 = vector.broadcast %31 : vector<8x1xf32> to vector<8x4xf32>
    %33 = arith.mulf %0, %32 : vector<8x4xf32>
    %cst_18 = arith.constant dense<0.000000e+00> : vector<4xf32>
    %34 = vector.multi_reduction <add>, %33, %cst_18 [0] : vector<8x4xf32> to vector<4xf32>
    %35 = vector.shape_cast %34 : vector<4xf32> to vector<1x4xf32>
    %cst_19 = arith.constant 0.000000e+00 : f32
    %36 = vector.broadcast %cst_19 : f32 to vector<1x4xf32>
    %37 = arith.maximumf %35, %36 : vector<1x4xf32>
    %38 = vector.broadcast %37 : vector<1x4xf32> to vector<8x4xf32>
    %39 = arith.mulf %1, %38 : vector<8x4xf32>
    %cst_20 = arith.constant dense<0.000000e+00> : vector<8xf32>
    %40 = vector.multi_reduction <add>, %39, %cst_20 [1] : vector<8x4xf32> to vector<8xf32>
    %41 = vector.shape_cast %40 : vector<8xf32> to vector<8x1xf32>
    %cst_21 = arith.constant 0.000000e+00 : f32
    %42 = vector.broadcast %cst_21 : f32 to vector<8x1xf32>
    %43 = arith.subf %42, %41 : vector<8x1xf32>
    %44 = math.exp %43 : vector<8x1xf32>
    %cst_22 = arith.constant 1.000000e+00 : f32
    %45 = vector.broadcast %cst_22 : f32 to vector<8x1xf32>
    %46 = arith.addf %45, %44 : vector<8x1xf32>
    %cst_23 = arith.constant 1.000000e+00 : f32
    %47 = vector.broadcast %cst_23 : f32 to vector<8x1xf32>
    %48 = arith.divf %47, %46 : vector<8x1xf32>
    %49 = vector.broadcast %48 : vector<8x1xf32> to vector<8x256xf32>
    %50 = arith.mulf %3, %49 : vector<8x256xf32>
    %c0_24 = arith.constant 0 : index
    %c0_25 = arith.constant 0 : index
    %51 = vector.load %arg6[%c0_24, %c0_25] : memref<8x256xf32, #tpu.memory_space<vmem>>, vector<8x256xf32>
    tpu.vector_store %arg6[%c0_24, %c0_25], %50 {strides = array<i32>} : memref<8x256xf32, #tpu.memory_space<vmem>>, vector<8x256xf32>,
    return
  }
  func.func @transform_0(%arg0: i32) -> (i32, i32) {
    %c0_i32 = arith.constant 0 : i32
    %c0_i32_0 = arith.constant 0 : i32
    return %arg0, %c0_i32 : i32, i32
  }
  func.func @transform_1(%arg0: i32) -> (i32, i32) {
    %c0_i32 = arith.constant 0 : i32
    %c0_i32_0 = arith.constant 0 : i32
    return %arg0, %c0_i32 : i32, i32
  }
  func.func @transform_2(%arg0: i32) -> (i32, i32) {
    %c0_i32 = arith.constant 0 : i32
    %c0_i32_0 = arith.constant 0 : i32
    %c0_i32_1 = arith.constant 0 : i32
    return %c0_i32, %c0_i32_0 : i32, i32
  }
  func.func @transform_3(%arg0: i32) -> (i32, i32) {
    %c0_i32 = arith.constant 0 : i32
    %c0_i32_0 = arith.constant 0 : i32
    %c0_i32_1 = arith.constant 0 : i32
    return %c0_i32, %c0_i32_0 : i32, i32
  }
  func.func @transform_4(%arg0: i32) -> (i32, i32) {
    %c0_i32 = arith.constant 0 : i32
    %c0_i32_0 = arith.constant 0 : i32
    return %arg0, %c0_i32 : i32, i32
  }
  func.func @transform_5(%arg0: i32) -> (i32, i32) {
    %c0_i32 = arith.constant 0 : i32
    %c0_i32_0 = arith.constant 0 : i32
    return %arg0, %c0_i32 : i32, i32
  }
}

</mosaic_0001>

<llo_original>
// kernel: fftnet_pallas.3
$region0: #{fftnet_pallas.3}
  #allocation0 [shape = 'u32[]', space=smem, size = 0x4, offset = 0x4, fixed_abs, tag = 'smem constant byte address 0x4 - core index']
  #allocation1 [shape = 'u32[144,128]{1,0:T(1,128)}', space=vmem, size = 0x12000, scoped, tag = 'internal scratch']
  %s0 = inlined_call_operand.vmem [shape: bf16[16,512], index: 0, kind: input, shape index: {}]
  %s1 = inlined_call_operand.vmem [shape: bf16[16,16], index: 1, kind: input, shape index: {}]
  %s2 = inlined_call_operand.vmem [shape: f32[16,1], index: 2, kind: output, shape index: {0}]
  %s3 = inlined_call_operand.vmem [shape: f32[16,1], index: 3, kind: output, shape index: {1}]
  %4 = xla_tuple %s2, %s3
  %s5 = sld [smem:[#allocation0]]
  $region30: #{fftnet_pallas.3} parent=0
    _
  %s7 = ssub.s32 1, %s5
  %s8 = scalar_select 0, %s7, %s5
  // Predicated region
  $region2: #{fftnet_pallas.3} parent=0 // pred_check
    _
  $region3: #{fftnet_pallas.3} parent=0 // pred_check_branch
    %10 = sbr.rel (0) target = $region5
  $region4: #{fftnet_pallas.3} parent=0 // pred_region
    _
  $region5: #{fftnet_pallas.3} parent=0 // pred_fallthru
    _
  // Predicated region
  $region6: #{fftnet_pallas.3} parent=0 // pred_check
    _
  $region7: #{fftnet_pallas.3} parent=0 // pred_check_branch
    %12 = sbr.rel (0) target = $region9
  $region8: #{fftnet_pallas.3} parent=0 // pred_region
    _
  $region9: #{fftnet_pallas.3} parent=0 // pred_fallthru
    _
  %p14 = scmp.eq.s32.totalorder 0, 0
  // Predicated region
  $region10: #{fftnet_pallas.3} parent=0 // pred_check
    %p15 = pneg %p14
  $region11: #{fftnet_pallas.3} parent=0 // pred_check_branch
    %17 = sbr.rel (%p15) target = $region13
  $region12: #{fftnet_pallas.3} parent=0 // pred_region
    %vm18 = vcmask 7168
    %19 = vst.msk [vmem:[%s2] sm:$0xff] %vm18, 0.0
    %20 = vst.msk [vmem:[%s2 + $0x8] sm:$0xff] %vm18, 0.0
    %21 = vst.msk [vmem:[%s3] sm:$0xff] %vm18, 0.0
    %22 = vst.msk [vmem:[%s3 + $0x8] sm:$0xff] %vm18, 0.0
  $region13: #{fftnet_pallas.3} parent=0 // pred_fallthru
    _
  %v23 = vld [vmem:[%s1] sm:$0xf]
  %v24 = vld [vmem:[%s1 + $0x4] sm:$0xf]
  %v25 = vld [vmem:[%s0] sm:$0xff]
  %v26 = vld [vmem:[%s0 + $0x8] sm:$0xff]
  %v27 = vld [vmem:[%s0 + $0x10] sm:$0xff]
  %v28 = vld [vmem:[%s0 + $0x18] sm:$0xff]
  %v31 = vunpack.c.l.b16 %v23
  %v32 = vunpack.c.l.b16 %v24
  %v33 = vpack.c.b16 %v32, %v31
  %v38 = vunpack.c.l.b16 %v25
  %v39 = vunpack.c.h.b16 %v25
  %v40 = vunpack.c.l.b16 %v26
  %v41 = vunpack.c.h.b16 %v26
  %v42 = vunpack.c.l.b16 %v27
  %v43 = vunpack.c.h.b16 %v27
  %v44 = vunpack.c.l.b16 %v28
  %v45 = vunpack.c.h.b16 %v28
  %v46 = vpack.c.b16 %v42, %v38
  %v47 = vpack.c.b16 %v43, %v39
  %v48 = vpack.c.b16 %v44, %v40
  %v49 = vpack.c.b16 %v45, %v41
  %vm54 = vcmask 130048
  %v56 = vsel %vm54, %v33, 0
  %58 = vmatprep.subr.bf16.mxu0 0
  %59 = vmatpush1.bf16.msra.mxu0 0
  %60 = vmatprep.subr.bf16.mxu0 0
  %61 = vmatpush1.bf16.msra.mxu0 0
  %62 = vmatprep.subr.bf16.mxu0 0
  %63 = vmatpush1.bf16.msra.mxu0 0
  %64 = vmatprep.subr.bf16.mxu0 0
  %65 = vmatpush1.bf16.msra.mxu0 0
  %66 = vmatprep.subr.bf16.mxu0 0
  %67 = vmatpush1.bf16.msra.mxu0 0
  %68 = vmatprep.subr.bf16.mxu0 0
  %69 = vmatpush1.bf16.msra.mxu0 0
  %70 = vmatprep.subr.bf16.mxu0 0
  %71 = vmatpush1.bf16.msra.mxu0 0
  %72 = vmatprep.subr.bf16.mxu0 %v47
  %73 = vmatpush1.bf16.msra.mxu0 %v46
  %74 = vmatprep.subr.bf16.mxu0 0
  %75 = vmatpush2.bf16.msra.mxu0 0
  %76 = vmatprep.subr.bf16.mxu0 0
  %77 = vmatpush2.bf16.msra.mxu0 0
  %78 = vmatprep.subr.bf16.mxu0 0
  %79 = vmatpush2.bf16.msra.mxu0 0
  %80 = vmatprep.subr.bf16.mxu0 0
  %81 = vmatpush2.bf16.msra.mxu0 0
  %82 = vmatprep.subr.bf16.mxu0 0
  %83 = vmatpush2.bf16.msra.mxu0 0
  %84 = vmatprep.subr.bf16.mxu0 0
  %85 = vmatpush2.bf16.msra.mxu0 0
  %86 = vmatprep.subr.bf16.mxu0 0
  %87 = vmatpush2.bf16.msra.mxu0 0
  %88 = vmatprep.subr.bf16.mxu0 0
  %89 = vmatpush2.bf16.msra.mxu0 0
  %90 = vmatprep.mubr.bf16.mxu0 0
  %91 = vmatmul.mubr.bf16.gmra.mxu0 %v56
  %v92 = vpop.f32.mrf.mxu0
  %v93 = vadd.f32 0.0, %v92
  %v94 = vpop.f32.mrf.mxu0
  %v95 = vadd.f32 0.0, %v94
  %v96 = vpop.f32.mrf.mxu0
  %v97 = vadd.f32 0.0, %v96
  %v98 = vpop.f32.mrf.mxu0
  %v99 = vadd.f32 0.0, %v98
  %100 = vdwg.mxu0
  %101 = vmatprep.subr.bf16.mxu0 0
  %102 = vmatpush1.bf16.msra.mxu0 0
  %103 = vmatprep.subr.bf16.mxu0 0
  %104 = vmatpush1.bf16.msra.mxu0 0
  %105 = vmatprep.subr.bf16.mxu0 0
  %106 = vmatpush1.bf16.msra.mxu0 0
  %107 = vmatprep.subr.bf16.mxu0 0
  %108 = vmatpush1.bf16.msra.mxu0 0
  %109 = vmatprep.subr.bf16.mxu0 0
  %110 = vmatpush1.bf16.msra.mxu0 0
  %111 = vmatprep.subr.bf16.mxu0 0
  %112 = vmatpush1.bf16.msra.mxu0 0
  %113 = vmatprep.subr.bf16.mxu0 0
  %114 = vmatpush1.bf16.msra.mxu0 0
  %115 = vmatprep.subr.bf16.mxu0 %v49
  %116 = vmatpush1.bf16.msra.mxu0 %v48
  %117 = vmatprep.subr.bf16.mxu0 0
  %118 = vmatpush2.bf16.msra.mxu0 0
  %119 = vmatprep.subr.bf16.mxu0 0
  %120 = vmatpush2.bf16.msra.mxu0 0
  %121 = vmatprep.subr.bf16.mxu0 0
  %122 = vmatpush2.bf16.msra.mxu0 0
  %123 = vmatprep.subr.bf16.mxu0 0
  %124 = vmatpush2.bf16.msra.mxu0 0
  %125 = vmatprep.subr.bf16.mxu0 0
  %126 = vmatpush2.bf16.msra.mxu0 0
  %127 = vmatprep.subr.bf16.mxu0 0
  %128 = vmatpush2.bf16.msra.mxu0 0
  %129 = vmatprep.subr.bf16.mxu0 0
  %130 = vmatpush2.bf16.msra.mxu0 0
  %131 = vmatprep.subr.bf16.mxu0 0
  %132 = vmatpush2.bf16.msra.mxu0 0
  %133 = vmatprep.mubr.bf16.mxu0 0
  %134 = vmatmul.mubr.bf16.gmra.mxu0 %v56
  %v135 = vpop.f32.mrf.mxu0
  %v136 = vadd.f32 0.0, %v135
  %v137 = vpop.f32.mrf.mxu0
  %v138 = vadd.f32 0.0, %v137
  %v139 = vpop.f32.mrf.mxu0
  %v140 = vadd.f32 0.0, %v139
  %v141 = vpop.f32.mrf.mxu0
  %v142 = vadd.f32 0.0, %v141
  %143 = vdwg.mxu0
  %v144 = vld [vmem:[%s2] sm:$0xff]
  %v145 = vld [vmem:[%s2 + $0x8] sm:$0xff]
  %v146 = vadd.f32 %v93, %v95
  %v147 = vadd.f32 %v146, %v136
  %v148 = vadd.f32 %v147, %v138
  %149 = vadd.xlane.f32.xlu0 %v148
  %v150 = vpop.xlane.xlu0 %149
  %v151 = vadd.f32 %v97, %v99
  %v152 = vadd.f32 %v151, %v140
  %v153 = vadd.f32 %v152, %v142
  %154 = vadd.xlane.f32.xlu0 %v153
  %v155 = vpop.xlane.xlu0 %154
  %v156 = vadd.f32 %v144, %v150
  %v157 = vadd.f32 %v145, %v155
  %vm158 = vcmask 7168
  %159 = vst.msk [vmem:[%s2] sm:$0xff] %vm158, %v156
  %160 = vst.msk [vmem:[%s2 + $0x8] sm:$0xff] %vm158, %v157
  %v161 = vld [vmem:[%s3] sm:$0xff]
  %v162 = vld [vmem:[%s3 + $0x8] sm:$0xff]
  %v163 = vmul.f32 %v93, %v93
  %v164 = vmul.f32 %v95, %v95
  %v165 = vmul.f32 %v136, %v136
  %v166 = vmul.f32 %v138, %v138
  %v167 = vmul.f32 %v97, %v97
  %v168 = vmul.f32 %v99, %v99
  %v169 = vmul.f32 %v140, %v140
  %v170 = vmul.f32 %v142, %v142
  %v171 = vadd.f32 %v163, %v164
  %v172 = vadd.f32 %v171, %v165
  %v173 = vadd.f32 %v172, %v166
  %174 = vadd.xlane.f32.xlu0 %v173
  %v175 = vpop.xlane.xlu0 %174
  %v176 = vadd.f32 %v167, %v168
  %v177 = vadd.f32 %v176, %v169
  %v178 = vadd.f32 %v177, %v170
  %179 = vadd.xlane.f32.xlu0 %v178
  %v180 = vpop.xlane.xlu0 %179
  %v181 = vadd.f32 %v161, %v175
  %v182 = vadd.f32 %v162, %v180
  %183 = vst.msk [vmem:[%s3] sm:$0xff] %vm158, %v181
  %184 = vst.msk [vmem:[%s3 + $0x8] sm:$0xff] %vm158, %v182
  // Predicated region
  $region14: #{fftnet_pallas.3} parent=0 // pred_check
    _
  $region15: #{fftnet_pallas.3} parent=0 // pred_check_branch
    %186 = sbr.rel (0) target = $region17
  $region16: #{fftnet_pallas.3} parent=0 // pred_region
    _
  $region17: #{fftnet_pallas.3} parent=0 // pred_fallthru
    _
  // Predicated region
  $region18: #{fftnet_pallas.3} parent=0 // pred_check
    _
  $region19: #{fftnet_pallas.3} parent=0 // pred_check_branch
    %188 = sbr.rel (0) target = $region21
  $region20: #{fftnet_pallas.3} parent=0 // pred_region
    _
  $region21: #{fftnet_pallas.3} parent=0 // pred_fallthru
    _
  // Predicated region
  $region22: #{fftnet_pallas.3} parent=0 // pred_check
    _
  $region23: #{fftnet_pallas.3} parent=0 // pred_check_branch
    %190 = sbr.rel (0) target = $region25
  $region24: #{fftnet_pallas.3} parent=0 // pred_region
    _
  $region25: #{fftnet_pallas.3} parent=0 // pred_fallthru
    _
  // Predicated region
  $region26: #{fftnet_pallas.3} parent=0 // pred_check
    _
  $region27: #{fftnet_pallas.3} parent=0 // pred_check_branch
    %192 = sbr.rel (0) target = $region29
  $region28: #{fftnet_pallas.3} parent=0 // pred_region
    _
  $region29: #{fftnet_pallas.3} parent=0 // pred_fallthru
    _

// kernel: fftnet_pallas.4
$region0: #{fftnet_pallas.4}
  #allocation0 [shape = 'u32[]', space=smem, size = 0x4, offset = 0x4, fixed_abs, tag = 'smem constant byte address 0x4 - core index']
  #allocation1 [shape = 'u32[144,128]{1,0:T(1,128)}', space=vmem, size = 0x12000, scoped, tag = 'internal scratch']
  %s0 = inlined_call_operand.vmem [shape: bf16[16,512], index: 0, kind: input, shape index: {}]
  %s1 = inlined_call_operand.vmem [shape: bf16[16,16], index: 1, kind: input, shape index: {}]
  %s2 = inlined_call_operand.vmem [shape: f32[16,1], index: 2, kind: input, shape index: {}]
  %s3 = inlined_call_operand.vmem [shape: f32[16,1], index: 3, kind: input, shape index: {}]
  %s4 = inlined_call_operand.vmem [shape: f32[16,512], index: 4, kind: output, shape index: {}]
  %s5 = sld [smem:[#allocation0]]
  $region26: #{fftnet_pallas.4} parent=0
    _
  %s7 = ssub.s32 1, %s5
  %s8 = scalar_select 0, %s7, %s5
  // Predicated region
  $region2: #{fftnet_pallas.4} parent=0 // pred_check
    _
  $region3: #{fftnet_pallas.4} parent=0 // pred_check_branch
    %10 = sbr.rel (0) target = $region5
  $region4: #{fftnet_pallas.4} parent=0 // pred_region
    _
  $region5: #{fftnet_pallas.4} parent=0 // pred_fallthru
    _
  // Predicated region
  $region6: #{fftnet_pallas.4} parent=0 // pred_check
    _
  $region7: #{fftnet_pallas.4} parent=0 // pred_check_branch
    %12 = sbr.rel (0) target = $region9
  $region8: #{fftnet_pallas.4} parent=0 // pred_region
    _
  $region9: #{fftnet_pallas.4} parent=0 // pred_fallthru
    _
  // Predicated region
  $region10: #{fftnet_pallas.4} parent=0 // pred_check
    _
  $region11: #{fftnet_pallas.4} parent=0 // pred_check_branch
    %14 = sbr.rel (0) target = $region13
  $region12: #{fftnet_pallas.4} parent=0 // pred_region
    _
  $region13: #{fftnet_pallas.4} parent=0 // pred_fallthru
    _
  // Predicated region
  $region14: #{fftnet_pallas.4} parent=0 // pred_check
    _
  $region15: #{fftnet_pallas.4} parent=0 // pred_check_branch
    %16 = sbr.rel (0) target = $region17
  $region16: #{fftnet_pallas.4} parent=0 // pred_region
    _
  $region17: #{fftnet_pallas.4} parent=0 // pred_fallthru
    _
  %v18 = vld [vmem:[%s1] sm:$0xf]
  %v19 = vld [vmem:[%s1 + $0x4] sm:$0xf]
  %v20 = vld [vmem:[%s0] sm:$0xff]
  %v21 = vld [vmem:[%s0 + $0x8] sm:$0xff]
  %v22 = vld [vmem:[%s0 + $0x10] sm:$0xff]
  %v23 = vld [vmem:[%s0 + $0x18] sm:$0xff]
  %v26 = vunpack.c.l.b16 %v18
  %v27 = vunpack.c.l.b16 %v19
  %v28 = vpack.c.b16 %v27, %v26
  %v33 = vunpack.c.l.b16 %v20
  %v34 = vunpack.c.h.b16 %v20
  %v35 = vunpack.c.l.b16 %v21
  %v36 = vunpack.c.h.b16 %v21
  %v37 = vunpack.c.l.b16 %v22
  %v38 = vunpack.c.h.b16 %v22
  %v39 = vunpack.c.l.b16 %v23
  %v40 = vunpack.c.h.b16 %v23
  %v41 = vpack.c.b16 %v37, %v33
  %v42 = vpack.c.b16 %v38, %v34
  %v43 = vpack.c.b16 %v39, %v35
  %v44 = vpack.c.b16 %v40, %v36
  %vm49 = vcmask 130048
  %v51 = vsel %vm49, %v28, 0
  %53 = vmatprep.subr.bf16.mxu0 0
  %54 = vmatpush1.bf16.msra.mxu0 0
  %55 = vmatprep.subr.bf16.mxu0 0
  %56 = vmatpush1.bf16.msra.mxu0 0
  %57 = vmatprep.subr.bf16.mxu0 0
  %58 = vmatpush1.bf16.msra.mxu0 0
  %59 = vmatprep.subr.bf16.mxu0 0
  %60 = vmatpush1.bf16.msra.mxu0 0
  %61 = vmatprep.subr.bf16.mxu0 0
  %62 = vmatpush1.bf16.msra.mxu0 0
  %63 = vmatprep.subr.bf16.mxu0 0
  %64 = vmatpush1.bf16.msra.mxu0 0
  %65 = vmatprep.subr.bf16.mxu0 0
  %66 = vmatpush1.bf16.msra.mxu0 0
  %67 = vmatprep.subr.bf16.mxu0 %v42
  %68 = vmatpush1.bf16.msra.mxu0 %v41
  %69 = vmatprep.subr.bf16.mxu0 0
  %70 = vmatpush2.bf16.msra.mxu0 0
  %71 = vmatprep.subr.bf16.mxu0 0
  %72 = vmatpush2.bf16.msra.mxu0 0
  %73 = vmatprep.subr.bf16.mxu0 0
  %74 = vmatpush2.bf16.msra.mxu0 0
  %75 = vmatprep.subr.bf16.mxu0 0
  %76 = vmatpush2.bf16.msra.mxu0 0
  %77 = vmatprep.subr.bf16.mxu0 0
  %78 = vmatpush2.bf16.msra.mxu0 0
  %79 = vmatprep.subr.bf16.mxu0 0
  %80 = vmatpush2.bf16.msra.mxu0 0
  %81 = vmatprep.subr.bf16.mxu0 0
  %82 = vmatpush2.bf16.msra.mxu0 0
  %83 = vmatprep.subr.bf16.mxu0 0
  %84 = vmatpush2.bf16.msra.mxu0 0
  %85 = vmatprep.mubr.bf16.mxu0 0
  %86 = vmatmul.mubr.bf16.gmra.mxu0 %v51
  %v87 = vpop.f32.mrf.mxu0
  %v88 = vadd.f32 0.0, %v87
  %v89 = vpop.f32.mrf.mxu0
  %v90 = vadd.f32 0.0, %v89
  %v91 = vpop.f32.mrf.mxu0
  %v92 = vadd.f32 0.0, %v91
  %v93 = vpop.f32.mrf.mxu0
  %v94 = vadd.f32 0.0, %v93
  %95 = vdwg.mxu0
  %96 = vmatprep.subr.bf16.mxu0 0
  %97 = vmatpush1.bf16.msra.mxu0 0
  %98 = vmatprep.subr.bf16.mxu0 0
  %99 = vmatpush1.bf16.msra.mxu0 0
  %100 = vmatprep.subr.bf16.mxu0 0
  %101 = vmatpush1.bf16.msra.mxu0 0
  %102 = vmatprep.subr.bf16.mxu0 0
  %103 = vmatpush1.bf16.msra.mxu0 0
  %104 = vmatprep.subr.bf16.mxu0 0
  %105 = vmatpush1.bf16.msra.mxu0 0
  %106 = vmatprep.subr.bf16.mxu0 0
  %107 = vmatpush1.bf16.msra.mxu0 0
  %108 = vmatprep.subr.bf16.mxu0 0
  %109 = vmatpush1.bf16.msra.mxu0 0
  %110 = vmatprep.subr.bf16.mxu0 %v44
  %111 = vmatpush1.bf16.msra.mxu0 %v43
  %112 = vmatprep.subr.bf16.mxu0 0
  %113 = vmatpush2.bf16.msra.mxu0 0
  %114 = vmatprep.subr.bf16.mxu0 0
  %115 = vmatpush2.bf16.msra.mxu0 0
  %116 = vmatprep.subr.bf16.mxu0 0
  %117 = vmatpush2.bf16.msra.mxu0 0
  %118 = vmatprep.subr.bf16.mxu0 0
  %119 = vmatpush2.bf16.msra.mxu0 0
  %120 = vmatprep.subr.bf16.mxu0 0
  %121 = vmatpush2.bf16.msra.mxu0 0
  %122 = vmatprep.subr.bf16.mxu0 0
  %123 = vmatpush2.bf16.msra.mxu0 0
  %124 = vmatprep.subr.bf16.mxu0 0
  %125 = vmatpush2.bf16.msra.mxu0 0
  %126 = vmatprep.subr.bf16.mxu0 0
  %127 = vmatpush2.bf16.msra.mxu0 0
  %128 = vmatprep.mubr.bf16.mxu0 0
  %129 = vmatmul.mubr.bf16.gmra.mxu0 %v51
  %v130 = vpop.f32.mrf.mxu0
  %v131 = vadd.f32 0.0, %v130
  %v132 = vpop.f32.mrf.mxu0
  %v133 = vadd.f32 0.0, %v132
  %v134 = vpop.f32.mrf.mxu0
  %v135 = vadd.f32 0.0, %v134
  %v136 = vpop.f32.mrf.mxu0
  %v137 = vadd.f32 0.0, %v136
  %138 = vdwg.mxu0
  %v139 = vld [vmem:[%s2] sm:$0xff]
  %v140 = vld [vmem:[%s2 + $0x8] sm:$0xff]
  %142 = vset.pattern.permute.xlu0 0
  %143 = vperm.xlu0 %142, %v139
  %v144 = vpop.permute.xlu0 %143
  %147 = vset.pattern.permute.xlu0 0
  %148 = vperm.xlu0 %147, %v140
  %v149 = vpop.permute.xlu0 %148
  %v151 = vmul.f32 %v88, %v144
  %v152 = vmul.f32 %v90, %v144
  %v153 = vmul.f32 %v131, %v144
  %v154 = vmul.f32 %v133, %v144
  %v155 = vmul.f32 %v92, %v149
  %v156 = vmul.f32 %v94, %v149
  %v157 = vmul.f32 %v135, %v149
  %v158 = vmul.f32 %v137, %v149
  %v159 = vld [vmem:[%s3] sm:$0xff]
  %v160 = vld [vmem:[%s3 + $0x8] sm:$0xff]
  %162 = vset.pattern.permute.xlu0 0
  %163 = vperm.xlu0 %162, %v159
  %v164 = vpop.permute.xlu0 %163
  %167 = vset.pattern.permute.xlu0 0
  %168 = vperm.xlu0 %167, %v160
  %v169 = vpop.permute.xlu0 %168
  %v171 = vadd.f32 %v151, %v164
  %v172 = vadd.f32 %v152, %v164
  %v173 = vadd.f32 %v153, %v164
  %v174 = vadd.f32 %v154, %v164
  %v175 = vadd.f32 %v155, %v169
  %v176 = vadd.f32 %v156, %v169
  %v177 = vadd.f32 %v157, %v169
  %v178 = vadd.f32 %v158, %v169
  %vm179 = vcmp.ge.f32.partialorder %v171, 0.0
  %vm180 = vcmp.ge.f32.partialorder %v172, 0.0
  %vm181 = vcmp.ge.f32.partialorder %v173, 0.0
  %vm182 = vcmp.ge.f32.partialorder %v174, 0.0
  %vm183 = vcmp.ge.f32.partialorder %v175, 0.0
  %vm184 = vcmp.ge.f32.partialorder %v176, 0.0
  %vm185 = vcmp.ge.f32.partialorder %v177, 0.0
  %vm186 = vcmp.ge.f32.partialorder %v178, 0.0
  %v187 = vmul.f32 %v171, 0.01
  %v188 = vmul.f32 %v172, 0.01
  %v189 = vmul.f32 %v173, 0.01
  %v190 = vmul.f32 %v174, 0.01
  %v191 = vmul.f32 %v175, 0.01
  %v192 = vmul.f32 %v176, 0.01
  %v193 = vmul.f32 %v177, 0.01
  %v194 = vmul.f32 %v178, 0.01
  %v195 = vsel %vm179, %v171, %v187
  %v196 = vsel %vm180, %v172, %v188
  %v197 = vsel %vm181, %v173, %v189
  %v198 = vsel %vm182, %v174, %v190
  %v199 = vsel %vm183, %v175, %v191
  %v200 = vsel %vm184, %v176, %v192
  %v201 = vsel %vm185, %v177, %v193
  %v202 = vsel %vm186, %v178, %v194
  %203 = vst [vmem:[%s4] sm:$0xff] %v195
  %204 = vst [vmem:[%s4 + $0x8] sm:$0xff] %v196
  %205 = vst [vmem:[%s4 + $0x10] sm:$0xff] %v197
  %206 = vst [vmem:[%s4 + $0x18] sm:$0xff] %v198
  %207 = vst [vmem:[%s4 + $0x20] sm:$0xff] %v199
  %208 = vst [vmem:[%s4 + $0x28] sm:$0xff] %v200
  %209 = vst [vmem:[%s4 + $0x30] sm:$0xff] %v201
  %210 = vst [vmem:[%s4 + $0x38] sm:$0xff] %v202
  // Predicated region
  $region18: #{fftnet_pallas.4} parent=0 // pred_check
    _
  $region19: #{fftnet_pallas.4} parent=0 // pred_check_branch
    %212 = sbr.rel (0) target = $region21
  $region20: #{fftnet_pallas.4} parent=0 // pred_region
    _
  $region21: #{fftnet_pallas.4} parent=0 // pred_fallthru
    _
  // Predicated region
  $region22: #{fftnet_pallas.4} parent=0 // pred_check
    _
  $region23: #{fftnet_pallas.4} parent=0 // pred_check_branch
    %214 = sbr.rel (0) target = $region25
  $region24: #{fftnet_pallas.4} parent=0 // pred_region
    _
  $region25: #{fftnet_pallas.4} parent=0 // pred_fallthru
    _

// kernel: fftnet_pallas.5
$region0: #{fftnet_pallas.5}
  #allocation0 [shape = 'u32[]', space=smem, size = 0x4, offset = 0x4, fixed_abs, tag = 'smem constant byte address 0x4 - core index']
  #allocation1 [shape = 'u32[144,128]{1,0:T(1,128)}', space=vmem, size = 0x12000, scoped, tag = 'internal scratch']
  %s0 = inlined_call_operand.vmem [shape: f32[8,256], index: 0, kind: input, shape index: {}]
  %s1 = inlined_call_operand.vmem [shape: f32[8,256], index: 1, kind: input, shape index: {}]
  %s2 = inlined_call_operand.vmem [shape: f32[8,4], index: 2, kind: input, shape index: {}]
  %s3 = inlined_call_operand.vmem [shape: f32[8,4], index: 3, kind: input, shape index: {}]
  %s4 = inlined_call_operand.vmem [shape: f32[8,256], index: 4, kind: output, shape index: {0}]
  %s5 = inlined_call_operand.vmem [shape: f32[8,256], index: 5, kind: output, shape index: {1}]
  %6 = xla_tuple %s4, %s5
  %s7 = sld [smem:[#allocation0]]
  $region34: #{fftnet_pallas.5} parent=0
    _
  %s9 = ssub.s32 1, %s7
  %s10 = scalar_select 0, %s9, %s7
  // Predicated region
  $region2: #{fftnet_pallas.5} parent=0 // pred_check
    _
  $region3: #{fftnet_pallas.5} parent=0 // pred_check_branch
    %12 = sbr.rel (0) target = $region5
  $region4: #{fftnet_pallas.5} parent=0 // pred_region
    _
  $region5: #{fftnet_pallas.5} parent=0 // pred_fallthru
    _
  // Predicated region
  $region6: #{fftnet_pallas.5} parent=0 // pred_check
    _
  $region7: #{fftnet_pallas.5} parent=0 // pred_check_branch
    %14 = sbr.rel (0) target = $region9
  $region8: #{fftnet_pallas.5} parent=0 // pred_region
    _
  $region9: #{fftnet_pallas.5} parent=0 // pred_fallthru
    _
  // Predicated region
  $region10: #{fftnet_pallas.5} parent=0 // pred_check
    _
  $region11: #{fftnet_pallas.5} parent=0 // pred_check_branch
    %16 = sbr.rel (0) target = $region13
  $region12: #{fftnet_pallas.5} parent=0 // pred_region
    _
  $region13: #{fftnet_pallas.5} parent=0 // pred_fallthru
    _
  // Predicated region
  $region14: #{fftnet_pallas.5} parent=0 // pred_check
    _
  $region15: #{fftnet_pallas.5} parent=0 // pred_check_branch
    %18 = sbr.rel (0) target = $region17
  $region16: #{fftnet_pallas.5} parent=0 // pred_region
    _
  $region17: #{fftnet_pallas.5} parent=0 // pred_fallthru
    _
  %v19 = vld [vmem:[%s2] sm:$0xff]
  %v20 = vld [vmem:[%s3] sm:$0xff]
  %v21 = vld [vmem:[%s0] sm:$0xff]
  %v22 = vld [vmem:[%s0 + $0x8] sm:$0xff]
  %v23 = vld [vmem:[%s1] sm:$0xff]
  %v24 = vld [vmem:[%s1 + $0x8] sm:$0xff]
  %v25 = vadd.f32 %v21, %v22
  %26 = vadd.xlane.f32.xlu0 %v25
  %v27 = vpop.xlane.xlu0 %26
  %v28 = vrcp.pop 256.0
  %v29 = vmul.f32 %v27, %v28
  %v30 = vmul.f32 %v19, %v29
  %vm31 = vcmask 31744
  %v32 = vsel %vm31, %v30, 0.0
  %v33 = vrot.slane %v32, 4
  %v34 = vadd.f32 %v32, %v33
  %v35 = vrot.slane %v34, 2
  %v36 = vadd.f32 %v34, %v35
  %v37 = vrot.slane %v36, 1
  %v38 = vadd.f32 %v36, %v37
  %v39 = vmax.f32 %v38, 0.0
  %v40 = vmul.f32 %v20, %v39
  %v41 = vsel %vm31, %v40, 0.0
  %42 = vadd.xlane.f32.xlu0 %v41
  %v43 = vpop.xlane.xlu0 %42
  %v44 = vsub.f32 0.0, %v43
  %v45 = vmul.f32 %v44, 1.442695
  %v46 = vpow.pop %v45
  %v47 = vadd.f32 %v46, 1.0
  %v48 = vrcp.pop %v47
  %v49 = vmul.f32 1.0, %v48
  %v50 = vmul.f32 %v21, %v49
  %v51 = vmul.f32 %v22, %v49
  %52 = vst [vmem:[%s4] sm:$0xff] %v50
  %53 = vst [vmem:[%s4 + $0x8] sm:$0xff] %v51
  %v54 = vadd.f32 %v23, %v24
  %55 = vadd.xlane.f32.xlu0 %v54
  %v56 = vpop.xlane.xlu0 %55
  %v57 = vmul.f32 %v56, %v28
  %v58 = vmul.f32 %v19, %v57
  %v59 = vsel %vm31, %v58, 0.0
  %v60 = vrot.slane %v59, 4
  %v61 = vadd.f32 %v59, %v60
  %v62 = vrot.slane %v61, 2
  %v63 = vadd.f32 %v61, %v62
  %v64 = vrot.slane %v63, 1
  %v65 = vadd.f32 %v63, %v64
  %v66 = vmax.f32 %v65, 0.0
  %v67 = vmul.f32 %v20, %v66
  %v68 = vsel %vm31, %v67, 0.0
  %69 = vadd.xlane.f32.xlu0 %v68
  %v70 = vpop.xlane.xlu0 %69
  %v71 = vsub.f32 0.0, %v70
  %v72 = vmul.f32 %v71, 1.442695
  %v73 = vpow.pop %v72
  %v74 = vadd.f32 %v73, 1.0
  %v75 = vrcp.pop %v74
  %v76 = vmul.f32 1.0, %v75
  %v77 = vmul.f32 %v23, %v76
  %v78 = vmul.f32 %v24, %v76
  %79 = vst [vmem:[%s5] sm:$0xff] %v77
  %80 = vst [vmem:[%s5 + $0x8] sm:$0xff] %v78
  // Predicated region
  $region18: #{fftnet_pallas.5} parent=0 // pred_check
    _
  $region19: #{fftnet_pallas.5} parent=0 // pred_check_branch
    %82 = sbr.rel (0) target = $region21
  $region20: #{fftnet_pallas.5} parent=0 // pred_region
    _
  $region21: #{fftnet_pallas.5} parent=0 // pred_fallthru
    _
  // Predicated region
  $region22: #{fftnet_pallas.5} parent=0 // pred_check
    _
  $region23: #{fftnet_pallas.5} parent=0 // pred_check_branch
    %84 = sbr.rel (0) target = $region25
  $region24: #{fftnet_pallas.5} parent=0 // pred_region
    _
  $region25: #{fftnet_pallas.5} parent=0 // pred_fallthru
    _
  // Predicated region
  $region26: #{fftnet_pallas.5} parent=0 // pred_check
    _
  $region27: #{fftnet_pallas.5} parent=0 // pred_check_branch
    %86 = sbr.rel (0) target = $region29
  $region28: #{fftnet_pallas.5} parent=0 // pred_region
    _
  $region29: #{fftnet_pallas.5} parent=0 // pred_fallthru
    _
  // Predicated region
  $region30: #{fftnet_pallas.5} parent=0 // pred_check
    _
  $region31: #{fftnet_pallas.5} parent=0 // pred_check_branch
    %88 = sbr.rel (0) target = $region33
  $region32: #{fftnet_pallas.5} parent=0 // pred_region
    _
  $region33: #{fftnet_pallas.5} parent=0 // pred_fallthru
    _

</llo_original>
